<compile_context>
chip_gen: v5e
topology: v5e:2x2
jax: 0.10.0
libtpu: 0.0.40
codegen_flags: <defaults>
</compile_context>

<pallas_src>
import jax
import jax.numpy as jnp
from jax.experimental import pallas as pl
from jax.experimental.pallas import tpu as pltpu


def _round_up(n, m):
    return ((n + m - 1) // m) * m


def autoencoder_kernel(x_ref, w1_ref, b1_ref, w2_ref, b2_ref, xrec_ref, e_ref):
    # Encoder: Linear + ReLU   (MXU matmul with f32 accumulation + VPU max)
    h = jnp.dot(x_ref[...], w1_ref[...], preferred_element_type=jnp.float32)
    e = jnp.maximum(h + b1_ref[...], 0.0)            # (TB, Dlat) + (1, Dlat)

    # Decoder: Linear + Sigmoid
    d = jnp.dot(e.astype(w2_ref.dtype), w2_ref[...],
                preferred_element_type=jnp.float32)
    d = d + b2_ref[...]                              # (TB, Din) + (1, Din)
    x_rec = jax.nn.sigmoid(d)                        # logistic -> EUP

    e_ref[...] = e.astype(e_ref.dtype)
    xrec_ref[...] = x_rec.astype(xrec_ref.dtype)


def autoencoder_forward(x, w1, b1, w2, b2, *, batch_tile=256, compute_dtype=None,
                        vmem_budget_bytes=40 * 1024 * 1024):
    N, input_dim = x.shape
    latent_dim = w1.shape[1]
    assert w1.shape == (input_dim, latent_dim)
    assert w2.shape == (latent_dim, input_dim)

    out_dtype = x.dtype
    in_dtype = jnp.dtype(compute_dtype) if compute_dtype is not None else jnp.dtype(x.dtype)

    # Lane-dense feature dims (multiples of 128). Zero padding is neutral:
    # padded latent columns are 0 after ReLU and hit zero rows of the padded W2,
    # and padded output columns are sliced away below.
    Din = _round_up(input_dim, 128)
    Dlat = _round_up(latent_dim, 128)

    isz = jnp.dtype(in_dtype).itemsize
    osz = jnp.dtype(out_dtype).itemsize

    # Batch tile: multiple of 8, no larger than the (padded) batch, shrunk until
    # the double-buffered working set fits the VMEM budget.
    bt = max(8, min(_round_up(batch_tile, 8), _round_up(N, 8)))

    def vmem_bytes(tile):
        per = 0
        per += 2 * tile * Din * isz            # x tile   (double-buffered)
        per += 2 * Din * Dlat * isz            # W1       (double-buffered by Pallas)
        per += 2 * Dlat * isz                  # b1
        per += 2 * Dlat * Din * isz            # W2
        per += 2 * Din * isz                   # b2
        per += 2 * tile * Din * osz            # x_rec tile
        per += 2 * tile * Dlat * osz           # e tile
        per += 4 * tile * max(Din, Dlat) * 4   # f32 intermediates headroom
        return per

    while bt > 8 and vmem_bytes(bt) > vmem_budget_bytes:
        bt = max(8, _round_up(bt // 2, 8))

    Np = _round_up(N, bt)
    grid = (Np // bt,)

    def pad2(a, rows, cols, dtype):
        a = a.astype(dtype)
        if a.shape == (rows, cols):
            return a
        return jnp.zeros((rows, cols), dtype).at[: a.shape[0], : a.shape[1]].set(a)

    xp = pad2(x, Np, Din, in_dtype)
    w1p = pad2(w1, Din, Dlat, in_dtype)
    b1p = pad2(b1.reshape(1, latent_dim), 1, Dlat, in_dtype)
    w2p = pad2(w2, Dlat, Din, in_dtype)
    b2p = pad2(b2.reshape(1, input_dim), 1, Din, in_dtype)

    out_shapes = (
        jax.ShapeDtypeStruct((Np, Din), out_dtype),    # x_ reconstruction
        jax.ShapeDtypeStruct((Np, Dlat), out_dtype),   # e latent
    )

    in_specs = [
        pl.BlockSpec((bt, Din), lambda i: (i, 0)),     # x tile
        pl.BlockSpec((Din, Dlat), lambda i: (0, 0)),   # W1 (constant block -> resident)
        pl.BlockSpec((1, Dlat), lambda i: (0, 0)),     # b1
        pl.BlockSpec((Dlat, Din), lambda i: (0, 0)),   # W2
        pl.BlockSpec((1, Din), lambda i: (0, 0)),      # b2
    ]
    out_specs = (
        pl.BlockSpec((bt, Din), lambda i: (i, 0)),
        pl.BlockSpec((bt, Dlat), lambda i: (i, 0)),
    )

    cost = pl.CostEstimate(
        flops=2 * Np * Din * Dlat * 2,                 # two matmuls
        transcendentals=Np * Din,                      # sigmoid
        bytes_accessed=(xp.size + w1p.size + b1p.size + w2p.size + b2p.size) * isz
        + (Np * Din + Np * Dlat) * osz,
    )

    vmem_limit = int(min(max(vmem_bytes(bt) * 1.25, 32 * 1024 * 1024),
                         100 * 1024 * 1024))

    x_rec_p, e_p = pl.pallas_call(
        autoencoder_kernel,
        out_shape=out_shapes,
        grid_spec=pltpu.PrefetchScalarGridSpec(
            num_scalar_prefetch=0,
            grid=grid,
            in_specs=in_specs,
            out_specs=out_specs,
        ),
        compiler_params=pltpu.CompilerParams(
            dimension_semantics=("parallel",),          # v7x: shard batch tiles over 2 TCs
            vmem_limit_bytes=vmem_limit,
        ),
        cost_estimate=cost,
    )(xp, w1p, b1p, w2p, b2p)

    # Strip the batch / lane padding.
    return x_rec_p[:N, :input_dim], e_p[:N, :latent_dim]


def init_params(key, input_dim, latent_dim, dtype=jnp.float32):
    # Deterministic init mimicking nn.Linear default (uniform +-1/sqrt(fan_in)).
    k1, k2, k3, k4 = jax.random.split(key, 4)
    bound1 = 1.0 / (input_dim ** 0.5)
    bound2 = 1.0 / (latent_dim ** 0.5)
    w1 = jax.random.uniform(k1, (input_dim, latent_dim), dtype, -bound1, bound1)
    b1 = jax.random.uniform(k2, (1, latent_dim), dtype, -bound1, bound1)
    w2 = jax.random.uniform(k3, (latent_dim, input_dim), dtype, -bound2, bound2)
    b2 = jax.random.uniform(k4, (1, input_dim), dtype, -bound2, bound2)
    return w1, b1, w2, b2


if __name__ == "__main__":
    key = jax.random.PRNGKey(0)
    kx, kp = jax.random.split(key)

    batch, input_dim, latent_dim = 16, 64, 32
    x = jax.random.normal(kx, (batch, input_dim), jnp.float32)
    w1, b1, w2, b2 = init_params(kp, input_dim, latent_dim)

    x_rec, e = autoencoder_forward(x, w1, b1, w2, b2)
    jax.block_until_ready((x_rec, e))

    # Reference check in plain JAX (same math as the PyTorch module).
    e_ref = jnp.maximum(x @ w1 + b1, 0.0)
    x_ref = jax.nn.sigmoid(e_ref @ w2 + b2)
    assert x_rec.shape == (batch, input_dim) and e.shape == (batch, latent_dim)
    assert jnp.allclose(e, e_ref, atol=2e-5), "latent mismatch"
    assert jnp.allclose(x_rec, x_ref, atol=2e-5), "reconstruction mismatch"

    print("KERNEL_OK")
</pallas_src>

<mosaic_0001>
module attributes {stable_mosaic.version = 11 : i64} {
  func.func @autoencoder_kernel(%arg0: i32, %arg1: memref<16x128xf32, #tpu.memory_space<vmem>>, %arg2: memref<128x128xf32, #tpu.memory_space<vmem>>, %arg3: memref<1x128xf32, #tpu.memory_space<vmem>>, %arg4: memref<128x128xf32, #tpu.memory_space<vmem>>, %arg5: memref<1x128xf32, #tpu.memory_space<vmem>>, %arg6: memref<16x128xf32, #tpu.memory_space<vmem>>, %arg7: memref<16x128xf32, #tpu.memory_space<vmem>>) attributes {dimension_semantics = [#tpu.dimension_semantics<parallel>], iteration_bounds = array<i64: 1>, scalar_prefetch = 0 : i64, scratch_operands = 0 : i64, tpu.core_type = #tpu.core_type<tc>, window_params = [{transform_indices = @transform_0, window_bounds = array<i64: 16, 128>}, {pipeline_mode = #tpu.pipeline_mode<synchronous>, transform_indices = @transform_1, window_bounds = array<i64: 128, 128>}, {pipeline_mode = #tpu.pipeline_mode<synchronous>, transform_indices = @transform_2, window_bounds = array<i64: 1, 128>}, {pipeline_mode = #tpu.pipeline_mode<synchronous>, transform_indices = @transform_3, window_bounds = array<i64: 128, 128>}, {pipeline_mode = #tpu.pipeline_mode<synchronous>, transform_indices = @transform_4, window_bounds = array<i64: 1, 128>}, {transform_indices = @transform_5, window_bounds = array<i64: 16, 128>}, {transform_indices = @transform_6, window_bounds = array<i64: 16, 128>}]} {
    %c0 = arith.constant 0 : index
    %c0_0 = arith.constant 0 : index
    %0 = vector.load %arg1[%c0, %c0_0] : memref<16x128xf32, #tpu.memory_space<vmem>>, vector<16x128xf32>
    %c0_1 = arith.constant 0 : index
    %c0_2 = arith.constant 0 : index
    %1 = vector.load %arg2[%c0_1, %c0_2] : memref<128x128xf32, #tpu.memory_space<vmem>>, vector<128x128xf32>
    %cst = arith.constant dense<0.000000e+00> : vector<16x128xf32>
    %2 = tpu.matmul %0, %1, %cst {dimension_numbers = #tpu.dot_dimension_numbers<[1], [0], [0], [1], [0, 0, 1, 1], [], []>} : vector<16x128xf32>, vector<128x128xf32>, vector<16x128xf32> -> vector<16x128xf32>
    %c0_3 = arith.constant 0 : index
    %c0_4 = arith.constant 0 : index
    %3 = vector.load %arg3[%c0_3, %c0_4] : memref<1x128xf32, #tpu.memory_space<vmem>>, vector<1x128xf32>
    %4 = vector.broadcast %3 : vector<1x128xf32> to vector<16x128xf32>
    %5 = arith.addf %2, %4 : vector<16x128xf32>
    %cst_5 = arith.constant 0.000000e+00 : f32
    %6 = vector.broadcast %cst_5 : f32 to vector<16x128xf32>
    %7 = arith.maximumf %5, %6 : vector<16x128xf32>
    %c0_6 = arith.constant 0 : index
    %c0_7 = arith.constant 0 : index
    %8 = vector.load %arg4[%c0_6, %c0_7] : memref<128x128xf32, #tpu.memory_space<vmem>>, vector<128x128xf32>
    %cst_8 = arith.constant dense<0.000000e+00> : vector<16x128xf32>
    %9 = tpu.matmul %7, %8, %cst_8 {dimension_numbers = #tpu.dot_dimension_numbers<[1], [0], [0], [1], [0, 0, 1, 1], [], []>} : vector<16x128xf32>, vector<128x128xf32>, vector<16x128xf32> -> vector<16x128xf32>
    %c0_9 = arith.constant 0 : index
    %c0_10 = arith.constant 0 : index
    %10 = vector.load %arg5[%c0_9, %c0_10] : memref<1x128xf32, #tpu.memory_space<vmem>>, vector<1x128xf32>
    %11 = vector.broadcast %10 : vector<1x128xf32> to vector<16x128xf32>
    %12 = arith.addf %9, %11 : vector<16x128xf32>
    %13 = arith.negf %12 : vector<16x128xf32>
    %14 = math.exp %13 : vector<16x128xf32>
    %cst_11 = arith.constant 1.000000e+00 : f32
    %15 = vector.broadcast %cst_11 : f32 to vector<16x128xf32>
    %16 = arith.addf %15, %14 : vector<16x128xf32>
    %17 = arith.divf %15, %16 : vector<16x128xf32>
    %c0_12 = arith.constant 0 : index
    %c0_13 = arith.constant 0 : index
    %18 = vector.load %arg7[%c0_12, %c0_13] : memref<16x128xf32, #tpu.memory_space<vmem>>, vector<16x128xf32>
    tpu.vector_store %arg7[%c0_12, %c0_13], %7 {strides = array<i32>} : memref<16x128xf32, #tpu.memory_space<vmem>>, vector<16x128xf32>,
    %c0_14 = arith.constant 0 : index
    %c0_15 = arith.constant 0 : index
    %19 = vector.load %arg6[%c0_14, %c0_15] : memref<16x128xf32, #tpu.memory_space<vmem>>, vector<16x128xf32>
    tpu.vector_store %arg6[%c0_14, %c0_15], %17 {strides = array<i32>} : memref<16x128xf32, #tpu.memory_space<vmem>>, vector<16x128xf32>,
    return
  }
  func.func @transform_0(%arg0: i32) -> (i32, i32) {
    %c0_i32 = arith.constant 0 : i32
    %c0_i32_0 = arith.constant 0 : i32
    return %arg0, %c0_i32 : i32, i32
  }
  func.func @transform_1(%arg0: i32) -> (i32, i32) {
    %c0_i32 = arith.constant 0 : i32
    %c0_i32_0 = arith.constant 0 : i32
    %c0_i32_1 = arith.constant 0 : i32
    return %c0_i32, %c0_i32_0 : i32, i32
  }
  func.func @transform_2(%arg0: i32) -> (i32, i32) {
    %c0_i32 = arith.constant 0 : i32
    %c0_i32_0 = arith.constant 0 : i32
    %c0_i32_1 = arith.constant 0 : i32
    return %c0_i32, %c0_i32_0 : i32, i32
  }
  func.func @transform_3(%arg0: i32) -> (i32, i32) {
    %c0_i32 = arith.constant 0 : i32
    %c0_i32_0 = arith.constant 0 : i32
    %c0_i32_1 = arith.constant 0 : i32
    return %c0_i32, %c0_i32_0 : i32, i32
  }
  func.func @transform_4(%arg0: i32) -> (i32, i32) {
    %c0_i32 = arith.constant 0 : i32
    %c0_i32_0 = arith.constant 0 : i32
    %c0_i32_1 = arith.constant 0 : i32
    return %c0_i32, %c0_i32_0 : i32, i32
  }
  func.func @transform_5(%arg0: i32) -> (i32, i32) {
    %c0_i32 = arith.constant 0 : i32
    %c0_i32_0 = arith.constant 0 : i32
    return %arg0, %c0_i32 : i32, i32
  }
  func.func @transform_6(%arg0: i32) -> (i32, i32) {
    %c0_i32 = arith.constant 0 : i32
    %c0_i32_0 = arith.constant 0 : i32
    return %arg0, %c0_i32 : i32, i32
  }
}

</mosaic_0001>

<llo_original>
// kernel: tpu_custom_call.1
$region0: #{tpu_custom_call.1}
  #allocation0 [shape = 'u32[]', space=smem, size = 0x4, offset = 0x4, fixed_abs, tag = 'smem constant byte address 0x4 - core index']
  #allocation1 [shape = 'u32[72,128]{1,0:T(1,128)}', space=vmem, size = 0x9000, scoped, tag = 'internal scratch']
  %s0 = inlined_call_operand.hbm [shape: f32[16,128], index: 0, kind: input, shape index: {}]
  %s1 = inlined_call_operand.hbm [shape: f32[128,128], index: 1, kind: input, shape index: {}]
  %s2 = inlined_call_operand.vmem [shape: f32[1,128], index: 2, kind: input, shape index: {}]
  %s3 = inlined_call_operand.hbm [shape: f32[128,128], index: 3, kind: input, shape index: {}]
  %s4 = inlined_call_operand.vmem [shape: f32[1,128], index: 4, kind: input, shape index: {}]
  %s5 = inlined_call_operand.hbm [shape: f32[16,128], index: 5, kind: output, shape index: {0}]
  %s6 = inlined_call_operand.hbm [shape: f32[16,128], index: 6, kind: output, shape index: {1}]
  %7 = xla_tuple %s5, %s6
  %s8 = sld [smem:[#allocation0]]
  $region50: #{tpu_custom_call.1} parent=0
    _
  %s10 = ssub.s32 1, %s8
  %s11 = scalar_select 0, %s10, %s8
  $region1: #{tpu_custom_call.1} parent=0
    #allocation2 [shape = 'u8[8192]{0}', space=vmem, size = 0x2000, scoped, tag = 'input window, operand 0, single buffered']
    #allocation3 [shape = 's32[1]{0}', space=sflag, size = 0x4, scoped, tag = 'scoped memory for tpu_custom_call.1']
    #allocation4 [shape = 's32[1]{0}', space=sflag, size = 0x4, scoped, tag = 'scoped memory for tpu_custom_call.1']
    #allocation5 [shape = 'u8[65536]{0}', space=vmem, size = 0x10000, scoped, tag = 'input window, operand 1, single buffered']
    #allocation6 [shape = 's32[1]{0}', space=sflag, size = 0x4, scoped, tag = 'scoped memory for tpu_custom_call.1']
    #allocation7 [shape = 'u8[65536]{0}', space=vmem, size = 0x10000, scoped, tag = 'input window, operand 3, single buffered']
    #allocation8 [shape = 'u8[8192]{0}', space=vmem, size = 0x2000, scoped, tag = 'output window, operand 0, single buffered']
    #allocation9 [shape = 'u8[8192]{0}', space=vmem, size = 0x2000, scoped, tag = 'output window, operand 1, single buffered']
    #allocation10 [shape = 's32[1]{0}', space=sflag, size = 0x4, scoped, tag = 'scoped memory for tpu_custom_call.1']
    %12 = vsyncpa [#allocation3], 0
    %13 = vsyncpa [#allocation6], 0
    %14 = vsyncpa [#allocation4], 0
    %15 = vsyncpa [#allocation10], 0
    // Predicated region
    $region2: #{tpu_custom_call.1} parent=1 // pred_check
      _
    $region3: #{tpu_custom_call.1} parent=1 // pred_check_branch
      %17 = sbr.rel (0) target = $region5
    $region4: #{tpu_custom_call.1} parent=1 // pred_region
      %19 = vsyncadd [#allocation3], 0
      %s20 = sshll.u32 %s0, 4
      %s21 = int_to_ptr.hbm [resolvable:$true] %s20
      %s22 = sshll.u32 [#allocation2], 4
      %s23 = int_to_ptr.vmem [resolvable:$true] %s22
      %28 = dma.hbm_to_vmem [thread:$0]  %s21, 256, %s23, [#allocation3], 128, 128, 8
    $region5: #{tpu_custom_call.1} parent=1 // pred_fallthru
      _
    // Predicated region
    $region6: #{tpu_custom_call.1} parent=1 // pred_check
      _
    $region7: #{tpu_custom_call.1} parent=1 // pred_check_branch
      %30 = sbr.rel (0) target = $region9
    $region8: #{tpu_custom_call.1} parent=1 // pred_region
      %32 = vsyncadd [#allocation6], 0
      %s33 = sshll.u32 %s1, 4
      %s34 = int_to_ptr.hbm [resolvable:$true] %s33
      %s35 = sshll.u32 [#allocation5], 4
      %s36 = int_to_ptr.vmem [resolvable:$true] %s35
      %41 = dma.hbm_to_vmem [thread:$0]  %s34, 2048, %s36, [#allocation6], 128, 128, 8
    $region9: #{tpu_custom_call.1} parent=1 // pred_fallthru
      _
    // Predicated region
    $region10: #{tpu_custom_call.1} parent=1 // pred_check
      _
    $region11: #{tpu_custom_call.1} parent=1 // pred_check_branch
      %43 = sbr.rel (0) target = $region13
    $region12: #{tpu_custom_call.1} parent=1 // pred_region
      _
    $region13: #{tpu_custom_call.1} parent=1 // pred_fallthru
      _
    // Predicated region
    $region14: #{tpu_custom_call.1} parent=1 // pred_check
      _
    $region15: #{tpu_custom_call.1} parent=1 // pred_check_branch
      %45 = sbr.rel (0) target = $region17
    $region16: #{tpu_custom_call.1} parent=1 // pred_region
      %47 = vsyncadd [#allocation6], 0
      %s48 = sshll.u32 %s3, 4
      %s49 = int_to_ptr.hbm [resolvable:$true] %s48
      %s50 = sshll.u32 [#allocation7], 4
      %s51 = int_to_ptr.vmem [resolvable:$true] %s50
      %56 = dma.hbm_to_vmem [thread:$0]  %s49, 2048, %s51, [#allocation6], 128, 128, 8
    $region17: #{tpu_custom_call.1} parent=1 // pred_fallthru
      _
    // Predicated region
    $region18: #{tpu_custom_call.1} parent=1 // pred_check
      _
    $region19: #{tpu_custom_call.1} parent=1 // pred_check_branch
      %58 = sbr.rel (0) target = $region21
    $region20: #{tpu_custom_call.1} parent=1 // pred_region
      _
    $region21: #{tpu_custom_call.1} parent=1 // pred_fallthru
      _
    // Predicated region
    $region22: #{tpu_custom_call.1} parent=1 // pred_check
      _
    $region23: #{tpu_custom_call.1} parent=1 // pred_check_branch
      %60 = sbr.rel (0) target = $region25
    $region24: #{tpu_custom_call.1} parent=1 // pred_region
      %62 = dma.done [#allocation3], 256
    $region25: #{tpu_custom_call.1} parent=1 // pred_fallthru
      _
    // Predicated region
    $region26: #{tpu_custom_call.1} parent=1 // pred_check
      _
    $region27: #{tpu_custom_call.1} parent=1 // pred_check_branch
      %64 = sbr.rel (0) target = $region29
    $region28: #{tpu_custom_call.1} parent=1 // pred_region
      %66 = dma.done [#allocation6], 2048
    $region29: #{tpu_custom_call.1} parent=1 // pred_fallthru
      _
    // Predicated region
    $region30: #{tpu_custom_call.1} parent=1 // pred_check
      _
    $region31: #{tpu_custom_call.1} parent=1 // pred_check_branch
      %68 = sbr.rel (0) target = $region33
    $region32: #{tpu_custom_call.1} parent=1 // pred_region
      %70 = dma.done [#allocation6], 2048
    $region33: #{tpu_custom_call.1} parent=1 // pred_fallthru
      _
    %v71 = vld [vmem:[#allocation2] sm:$0xff]
    %v72 = vld [vmem:[#allocation2 + $0x8] sm:$0xff]
    %v73 = vld [vmem:[#allocation5] sm:$0xff]
    %v74 = vld [vmem:[#allocation5 + $0x8] sm:$0xff]
    %v75 = vld [vmem:[#allocation5 + $0x10] sm:$0xff]
    %v76 = vld [vmem:[#allocation5 + $0x18] sm:$0xff]
    %v77 = vld [vmem:[#allocation5 + $0x20] sm:$0xff]
    %v78 = vld [vmem:[#allocation5 + $0x28] sm:$0xff]
    %v79 = vld [vmem:[#allocation5 + $0x30] sm:$0xff]
    %v80 = vld [vmem:[#allocation5 + $0x38] sm:$0xff]
    %v81 = vld [vmem:[#allocation5 + $0x40] sm:$0xff]
    %v82 = vld [vmem:[#allocation5 + $0x48] sm:$0xff]
    %v83 = vld [vmem:[#allocation5 + $0x50] sm:$0xff]
    %v84 = vld [vmem:[#allocation5 + $0x58] sm:$0xff]
    %v85 = vld [vmem:[#allocation5 + $0x60] sm:$0xff]
    %v86 = vld [vmem:[#allocation5 + $0x68] sm:$0xff]
    %v87 = vld [vmem:[#allocation5 + $0x70] sm:$0xff]
    %v88 = vld [vmem:[#allocation5 + $0x78] sm:$0xff]
    %v89 = vld [vmem:[%s2] sm:$0x1]
    %v91 = vperm.slane %v89, 0
    %93 = vmatpush.msra.mxu0 %v88
    %94 = vmatpush.msra.mxu0 %v87
    %95 = vmatpush.msra.mxu0 %v86
    %96 = vmatpush.msra.mxu0 %v85
    %97 = vmatpush.msra.mxu0 %v84
    %98 = vmatpush.msra.mxu0 %v83
    %99 = vmatpush.msra.mxu0 %v82
    %100 = vmatpush.msra.mxu0 %v81
    %101 = vmatpush.msra.mxu0 %v80
    %102 = vmatpush.msra.mxu0 %v79
    %103 = vmatpush.msra.mxu0 %v78
    %104 = vmatpush.msra.mxu0 %v77
    %105 = vmatpush.msra.mxu0 %v76
    %106 = vmatpush.msra.mxu0 %v75
    %107 = vmatpush.msra.mxu0 %v74
    %108 = vmatpush.msra.mxu0 %v73
    %109 = vmatmul.f32.gmra.mxu0 %v71
    %v110 = vpop.f32.mrf.mxu0
    %v111 = vadd.f32 %v91, %v110
    %112 = vmatmul.f32.gmra.mxu0 %v72
    %v113 = vpop.f32.mrf.mxu0
    %v114 = vadd.f32 %v91, %v113
    %115 = vdwg.mxu0
    %v116 = vmax.f32 %v111, 0.0
    %v117 = vmax.f32 %v114, 0.0
    %v118 = vld [vmem:[#allocation7] sm:$0xff]
    %v119 = vld [vmem:[#allocation7 + $0x8] sm:$0xff]
    %v120 = vld [vmem:[#allocation7 + $0x10] sm:$0xff]
    %v121 = vld [vmem:[#allocation7 + $0x18] sm:$0xff]
    %v122 = vld [vmem:[#allocation7 + $0x20] sm:$0xff]
    %v123 = vld [vmem:[#allocation7 + $0x28] sm:$0xff]
    %v124 = vld [vmem:[#allocation7 + $0x30] sm:$0xff]
    %v125 = vld [vmem:[#allocation7 + $0x38] sm:$0xff]
    %v126 = vld [vmem:[#allocation7 + $0x40] sm:$0xff]
    %v127 = vld [vmem:[#allocation7 + $0x48] sm:$0xff]
    %v128 = vld [vmem:[#allocation7 + $0x50] sm:$0xff]
    %v129 = vld [vmem:[#allocation7 + $0x58] sm:$0xff]
    %v130 = vld [vmem:[#allocation7 + $0x60] sm:$0xff]
    %v131 = vld [vmem:[#allocation7 + $0x68] sm:$0xff]
    %v132 = vld [vmem:[#allocation7 + $0x70] sm:$0xff]
    %v133 = vld [vmem:[#allocation7 + $0x78] sm:$0xff]
    %v134 = vld [vmem:[%s4] sm:$0x1]
    %v136 = vperm.slane %v134, 0
    %138 = vmatpush.msra.mxu0 %v133
    %139 = vmatpush.msra.mxu0 %v132
    %140 = vmatpush.msra.mxu0 %v131
    %141 = vmatpush.msra.mxu0 %v130
    %142 = vmatpush.msra.mxu0 %v129
    %143 = vmatpush.msra.mxu0 %v128
    %144 = vmatpush.msra.mxu0 %v127
    %145 = vmatpush.msra.mxu0 %v126
    %146 = vmatpush.msra.mxu0 %v125
    %147 = vmatpush.msra.mxu0 %v124
    %148 = vmatpush.msra.mxu0 %v123
    %149 = vmatpush.msra.mxu0 %v122
    %150 = vmatpush.msra.mxu0 %v121
    %151 = vmatpush.msra.mxu0 %v120
    %152 = vmatpush.msra.mxu0 %v119
    %153 = vmatpush.msra.mxu0 %v118
    %154 = vmatmul.f32.gmra.mxu0 %v116
    %v155 = vpop.f32.mrf.mxu0
    %v156 = vadd.f32 %v136, %v155
    %157 = vmatmul.f32.gmra.mxu0 %v117
    %v158 = vpop.f32.mrf.mxu0
    %v159 = vadd.f32 %v136, %v158
    %160 = vdwg.mxu0
    %v161 = vxor.u32 %v156, 2147483648
    %v162 = vxor.u32 %v159, 2147483648
    %v163 = vmul.f32 %v161, 1.442695
    %v164 = vpow.pop %v163
    %v165 = vmul.f32 %v162, 1.442695
    %v166 = vpow.pop %v165
    %v167 = vadd.f32 %v164, 1.0
    %v168 = vadd.f32 %v166, 1.0
    %v169 = vrcp.pop %v167
    %v170 = vmul.f32 %v167, %v169
    %v171 = vsub.f32 1.0, %v170
    %v172 = vmul.f32 %v169, %v171
    %v173 = vadd.f32 %v169, %v172
    %vm174 = vweird.f32 %v167
    %vm175 = vweird.f32 %v169
    %vm176 = vmor %vm174, %vm175
    %v177 = vsel %vm176, %v169, %v173
    %v178 = vand.u32 2147483647, %v167
    %vm179 = vcmp.eq.f32.partialorder %v178, 8.507059e+37
    %v180 = vand.u32 %v167, 2147483648
    %v181 = vor.u32 1.1754944e-38, %v180
    %v182 = vsel %vm179, %v181, %v177
    %v183 = vmul.f32 1.0, %v182
    %v184 = vrcp.pop %v168
    %v185 = vmul.f32 %v168, %v184
    %v186 = vsub.f32 1.0, %v185
    %v187 = vmul.f32 %v184, %v186
    %v188 = vadd.f32 %v184, %v187
    %vm189 = vweird.f32 %v168
    %vm190 = vweird.f32 %v184
    %vm191 = vmor %vm189, %vm190
    %v192 = vsel %vm191, %v184, %v188
    %v193 = vand.u32 2147483647, %v168
    %vm194 = vcmp.eq.f32.partialorder %v193, 8.507059e+37
    %v195 = vand.u32 %v168, 2147483648
    %v196 = vor.u32 1.1754944e-38, %v195
    %v197 = vsel %vm194, %v196, %v192
    %v198 = vmul.f32 1.0, %v197
    %199 = vst [vmem:[#allocation9] sm:$0xff] %v116
    %200 = vst [vmem:[#allocation9 + $0x8] sm:$0xff] %v117
    %201 = vst [vmem:[#allocation8] sm:$0xff] %v183
    %202 = vst [vmem:[#allocation8 + $0x8] sm:$0xff] %v198
    // Predicated region
    $region34: #{tpu_custom_call.1} parent=1 // pred_check
      _
    $region35: #{tpu_custom_call.1} parent=1 // pred_check_branch
      %204 = sbr.rel (0) target = $region37
    $region36: #{tpu_custom_call.1} parent=1 // pred_region
      %206 = vsyncadd [#allocation4], 0
      %s207 = sshll.u32 [#allocation8], 4
      %s208 = int_to_ptr.vmem [resolvable:$true] %s207
      %s209 = sshll.u32 %s5, 4
      %s210 = int_to_ptr.hbm [resolvable:$true] %s209
      %215 = dma.vmem_to_hbm [thread:$0]  %s208, 256, %s210, [#allocation4], 128, 128, 8
    $region37: #{tpu_custom_call.1} parent=1 // pred_fallthru
      _
    // Predicated region
    $region38: #{tpu_custom_call.1} parent=1 // pred_check
      _
    $region39: #{tpu_custom_call.1} parent=1 // pred_check_branch
      %217 = sbr.rel (0) target = $region41
    $region40: #{tpu_custom_call.1} parent=1 // pred_region
      %219 = vsyncadd [#allocation10], 0
      %s220 = sshll.u32 [#allocation9], 4
      %s221 = int_to_ptr.vmem [resolvable:$true] %s220
      %s222 = sshll.u32 %s6, 4
      %s223 = int_to_ptr.hbm [resolvable:$true] %s222
      %228 = dma.vmem_to_hbm [thread:$0]  %s221, 256, %s223, [#allocation10], 128, 128, 8
    $region41: #{tpu_custom_call.1} parent=1 // pred_fallthru
      _
    // Predicated region
    $region42: #{tpu_custom_call.1} parent=1 // pred_check
      _
    $region43: #{tpu_custom_call.1} parent=1 // pred_check_branch
      %230 = sbr.rel (0) target = $region45
    $region44: #{tpu_custom_call.1} parent=1 // pred_region
      %232 = dma.done [#allocation4], 256
    $region45: #{tpu_custom_call.1} parent=1 // pred_fallthru
      _
    // Predicated region
    $region46: #{tpu_custom_call.1} parent=1 // pred_check
      _
    $region47: #{tpu_custom_call.1} parent=1 // pred_check_branch
      %234 = sbr.rel (0) target = $region49
    $region48: #{tpu_custom_call.1} parent=1 // pred_region
      %236 = dma.done [#allocation10], 256
    $region49: #{tpu_custom_call.1} parent=1 // pred_fallthru
      _
    %237 = vsyncpa [#allocation3], 1
    %238 = vsyncpa [#allocation6], 1
    %239 = vsyncpa [#allocation4], 1
    %240 = vsyncpa [#allocation10], 1

</llo_original>
